<compile_context>
chip_gen: v5e
topology: v5e:2x2
jax: 0.10.0
libtpu: 0.0.40
codegen_flags: <defaults>
</compile_context>

<pallas_src>
import functools

import jax
import jax.numpy as jnp
from jax.experimental import pallas as pl
from jax.experimental.pallas import tpu as pltpu


def _round_up(x, m):
    return (x + m - 1) // m * m


def _lora_plus_matmul_kernel(x_ref, w_ref, bias_ref, o_ref, acc_ref):
    """Computes one (tm, tn) output tile, accumulating over the K grid axis."""
    k = pl.program_id(2)

    @pl.when(k == 0)
    def _init():
        acc_ref[...] = jnp.zeros_like(acc_ref)

    acc_ref[...] += jnp.dot(x_ref[...], w_ref[...],
                            preferred_element_type=jnp.float32)

    # Bias add + downcast only once, in the finalize step (keeps the inner
    # loop pure MXU + accumulate).
    @pl.when(k == pl.num_programs(2) - 1)
    def _finalize():
        o_ref[...] = (acc_ref[...] + bias_ref[...]).astype(o_ref.dtype)


def lora_plus_forward(x, weight, bias, lora_A, lora_B, *, alpha=1, rank=4,
                      compute_dtype=None, tm=256, tn=256, tk=512):
    """LoRAPlus forward.

    x: (B, S, IN); weight: (OUT, IN); bias: (OUT,)
    lora_A: (OUT, rank); lora_B: (rank, IN)
    returns (B, S, OUT) = x @ W^T + bias + (x @ lora_B^T) @ lora_A^T * (alpha/rank)
    """
    B, S, IN = x.shape
    OUT, _ = weight.shape
    M = B * S
    scaling = alpha / rank
    out_dtype = x.dtype
    if compute_dtype is None:
        compute_dtype = x.dtype

    # Merge the tiny LoRA delta into the transposed weight (f32), once per call.
    w_eff = (weight.astype(jnp.float32).T
             + scaling * (lora_B.astype(jnp.float32).T
                          @ lora_A.astype(jnp.float32).T))          # (IN, OUT)

    # Effective tile sizes: respect the (8, 128) layout rule and the real sizes.
    tm_eff = min(tm, _round_up(M, 8))
    tn_eff = min(tn, _round_up(OUT, 128))   # lane-dense output stores
    tk_eff = min(tk, _round_up(IN, 128))

    M_pad = _round_up(M, tm_eff)
    OUT_pad = _round_up(OUT, tn_eff)
    IN_pad = _round_up(IN, tk_eff)

    x2d = x.reshape(M, IN).astype(compute_dtype)
    x_p = jnp.pad(x2d, ((0, M_pad - M), (0, IN_pad - IN)))
    w_p = jnp.pad(w_eff.astype(compute_dtype),
                  ((0, IN_pad - IN), (0, OUT_pad - OUT)))
    b_p = jnp.pad(bias.astype(jnp.float32), (0, OUT_pad - OUT)).reshape(1, OUT_pad)

    grid = (M_pad // tm_eff, OUT_pad // tn_eff, IN_pad // tk_eff)

    out_p = pl.pallas_call(
        _lora_plus_matmul_kernel,
        out_shape=jax.ShapeDtypeStruct((M_pad, OUT_pad), out_dtype),
        grid_spec=pltpu.PrefetchScalarGridSpec(
            num_scalar_prefetch=0,
            grid=grid,
            in_specs=[
                pl.BlockSpec((tm_eff, tk_eff), lambda i, j, k: (i, k)),   # x
                pl.BlockSpec((tk_eff, tn_eff), lambda i, j, k: (k, j)),   # W_eff
                pl.BlockSpec((1, tn_eff), lambda i, j, k: (0, j)),        # bias
            ],
            out_specs=pl.BlockSpec((tm_eff, tn_eff), lambda i, j, k: (i, j)),
            scratch_shapes=[pltpu.VMEM((tm_eff, tn_eff), jnp.float32)],
        ),
        compiler_params=pltpu.CompilerParams(
            dimension_semantics=("parallel", "parallel", "arbitrary"),
            vmem_limit_bytes=32 * 1024 * 1024,
        ),
    )(x_p, w_p, b_p)

    return out_p[:M, :OUT].reshape(B, S, OUT)


if __name__ == "__main__":
    # Small shapes implied by the forward: (batch, seq, in_features)
    batch, seq, in_features, out_features, rank, alpha = 2, 8, 32, 32, 4, 1

    key = jax.random.PRNGKey(0)
    kx, kw, kb, ka, klb = jax.random.split(key, 5)

    x = jax.random.normal(kx, (batch, seq, in_features), dtype=jnp.float32)
    # base nn.Linear(in_features, out_features): weight (out, in), bias (out,)
    weight = jax.random.normal(kw, (out_features, in_features), dtype=jnp.float32) * 0.05
    bias = jax.random.normal(kb, (out_features,), dtype=jnp.float32) * 0.05
    # LoRA params, mirroring torch.randn(...) * 0.01
    lora_A = jax.random.normal(ka, (out_features, rank), dtype=jnp.float32) * 0.01
    lora_B = jax.random.normal(klb, (rank, in_features), dtype=jnp.float32) * 0.01

    # Pure-JAX reference (exact module semantics)
    scaling = alpha / rank
    x2d = x.reshape(-1, in_features)
    ref = (x2d @ weight.T + bias) + (x2d @ lora_B.T) @ lora_A.T * scaling
    ref = ref.reshape(batch, seq, out_features)

    # f32 compute path — tight tolerance.
    fwd_f32 = jax.jit(functools.partial(lora_plus_forward, alpha=alpha, rank=rank))
    out_f32 = jax.block_until_ready(fwd_f32(x, weight, bias, lora_A, lora_B))
    assert out_f32.shape == ref.shape
    assert jnp.allclose(out_f32, ref, atol=1e-5, rtol=1e-5), "f32 mismatch vs reference"

    # bf16 compute path (bf16 inputs, f32 accumulate) — loose tolerance.
    fwd_bf16 = jax.jit(functools.partial(lora_plus_forward, alpha=alpha, rank=rank,
                                         compute_dtype=jnp.bfloat16))
    out_bf16 = jax.block_until_ready(fwd_bf16(x, weight, bias, lora_A, lora_B))
    assert jnp.allclose(out_bf16.astype(jnp.float32), ref, atol=3e-2, rtol=3e-2), \
        "bf16 mismatch vs reference"

    # lr_ratio only affects optimizer behaviour, not the forward pass — nothing to do here.
    print("KERNEL_OK")
</pallas_src>

<mosaic_0001>
module attributes {stable_mosaic.version = 11 : i64} {
  func.func @_lora_plus_matmul_kernel(%arg0: i32, %arg1: i32, %arg2: i32, %arg3: memref<16x128xf32, #tpu.memory_space<vmem>>, %arg4: memref<128x128xf32, #tpu.memory_space<vmem>>, %arg5: memref<1x128xf32, #tpu.memory_space<vmem>>, %arg6: memref<16x128xf32, #tpu.memory_space<vmem>>, %arg7: memref<16x128xf32, #tpu.memory_space<vmem>>) attributes {dimension_semantics = [#tpu.dimension_semantics<parallel>, #tpu.dimension_semantics<parallel>, #tpu.dimension_semantics<arbitrary>], iteration_bounds = array<i64: 1, 1, 1>, scalar_prefetch = 0 : i64, scratch_operands = 1 : i64, tpu.core_type = #tpu.core_type<tc>, window_params = [{transform_indices = @transform_0, window_bounds = array<i64: 16, 128>}, {transform_indices = @transform_1, window_bounds = array<i64: 128, 128>}, {transform_indices = @transform_2, window_bounds = array<i64: 1, 128>}, {transform_indices = @transform_3, window_bounds = array<i64: 16, 128>}]} {
    %c0_i32 = arith.constant 0 : i32
    %0 = arith.cmpi eq, %arg2, %c0_i32 : i32
    %1 = arith.extui %0 : i1 to i32
    %c0_i32_0 = arith.constant 0 : i32
    %2 = arith.cmpi ne, %1, %c0_i32_0 : i32
    scf.if %2 {
      %cst_10 = arith.constant 0.000000e+00 : f32
      %12 = vector.broadcast %cst_10 : f32 to vector<16x128xf32>
      %c0_11 = arith.constant 0 : index
      %c0_12 = arith.constant 0 : index
      %13 = vector.load %arg7[%c0_11, %c0_12] : memref<16x128xf32, #tpu.memory_space<vmem>>, vector<16x128xf32>
      tpu.vector_store %arg7[%c0_11, %c0_12], %12 {strides = array<i32>} : memref<16x128xf32, #tpu.memory_space<vmem>>, vector<16x128xf32>,
    } else {
    }
    %c0 = arith.constant 0 : index
    %c0_1 = arith.constant 0 : index
    %3 = vector.load %arg7[%c0, %c0_1] : memref<16x128xf32, #tpu.memory_space<vmem>>, vector<16x128xf32>
    %c0_2 = arith.constant 0 : index
    %c0_3 = arith.constant 0 : index
    %4 = vector.load %arg3[%c0_2, %c0_3] : memref<16x128xf32, #tpu.memory_space<vmem>>, vector<16x128xf32>
    %c0_4 = arith.constant 0 : index
    %c0_5 = arith.constant 0 : index
    %5 = vector.load %arg4[%c0_4, %c0_5] : memref<128x128xf32, #tpu.memory_space<vmem>>, vector<128x128xf32>
    %cst = arith.constant dense<0.000000e+00> : vector<16x128xf32>
    %6 = tpu.matmul %4, %5, %cst {dimension_numbers = #tpu.dot_dimension_numbers<[1], [0], [0], [1], [0, 0, 1, 1], [], []>} : vector<16x128xf32>, vector<128x128xf32>, vector<16x128xf32> -> vector<16x128xf32>
    %7 = arith.addf %3, %6 : vector<16x128xf32>
    %c0_6 = arith.constant 0 : index
    %c0_7 = arith.constant 0 : index
    %8 = vector.load %arg7[%c0_6, %c0_7] : memref<16x128xf32, #tpu.memory_space<vmem>>, vector<16x128xf32>
    tpu.vector_store %arg7[%c0_6, %c0_7], %7 {strides = array<i32>} : memref<16x128xf32, #tpu.memory_space<vmem>>, vector<16x128xf32>,
    %c0_i32_8 = arith.constant 0 : i32
    %9 = arith.cmpi eq, %arg2, %c0_i32_8 : i32
    %10 = arith.extui %9 : i1 to i32
    %c0_i32_9 = arith.constant 0 : i32
    %11 = arith.cmpi ne, %10, %c0_i32_9 : i32
    scf.if %11 {
      %c0_10 = arith.constant 0 : index
      %c0_11 = arith.constant 0 : index
      %12 = vector.load %arg7[%c0_10, %c0_11] : memref<16x128xf32, #tpu.memory_space<vmem>>, vector<16x128xf32>
      %c0_12 = arith.constant 0 : index
      %c0_13 = arith.constant 0 : index
      %13 = vector.load %arg5[%c0_12, %c0_13] : memref<1x128xf32, #tpu.memory_space<vmem>>, vector<1x128xf32>
      %14 = vector.broadcast %13 : vector<1x128xf32> to vector<16x128xf32>
      %15 = arith.addf %12, %14 : vector<16x128xf32>
      %c0_14 = arith.constant 0 : index
      %c0_15 = arith.constant 0 : index
      %16 = vector.load %arg6[%c0_14, %c0_15] : memref<16x128xf32, #tpu.memory_space<vmem>>, vector<16x128xf32>
      tpu.vector_store %arg6[%c0_14, %c0_15], %15 {strides = array<i32>} : memref<16x128xf32, #tpu.memory_space<vmem>>, vector<16x128xf32>,
    } else {
    }
    return
  }
  func.func @transform_0(%arg0: i32, %arg1: i32, %arg2: i32) -> (i32, i32) {
    %c0_i32 = arith.constant 0 : i32
    return %arg0, %arg2 : i32, i32
  }
  func.func @transform_1(%arg0: i32, %arg1: i32, %arg2: i32) -> (i32, i32) {
    %c0_i32 = arith.constant 0 : i32
    return %arg2, %arg1 : i32, i32
  }
  func.func @transform_2(%arg0: i32, %arg1: i32, %arg2: i32) -> (i32, i32) {
    %c0_i32 = arith.constant 0 : i32
    %c0_i32_0 = arith.constant 0 : i32
    return %c0_i32, %arg1 : i32, i32
  }
  func.func @transform_3(%arg0: i32, %arg1: i32, %arg2: i32) -> (i32, i32) {
    %c0_i32 = arith.constant 0 : i32
    return %arg0, %arg1 : i32, i32
  }
}

</mosaic_0001>

<llo_original>
// kernel: lora_plus_forward.1
$region0: #{lora_plus_forward.1}
  #allocation0 [shape = 'u32[]', space=smem, size = 0x4, offset = 0x4, fixed_abs, tag = 'smem constant byte address 0x4 - core index']
  #allocation1 [shape = 'u32[72,128]{1,0:T(1,128)}', space=vmem, size = 0x9000, scoped, tag = 'internal scratch']
  #allocation2 [shape = 'f32[16,128]{1,0:T(8,128)}', space=vmem, size = 0x2000, scoped, tag = 'scratch operand']
  %s0 = inlined_call_operand.vmem [shape: f32[16,128], index: 0, kind: input, shape index: {}]
  %s1 = inlined_call_operand.vmem [shape: f32[128,128], index: 1, kind: input, shape index: {}]
  %s2 = inlined_call_operand.vmem [shape: f32[1,128], index: 2, kind: input, shape index: {}]
  %s3 = inlined_call_operand.vmem [shape: f32[16,128], index: 3, kind: output, shape index: {}]
  %s4 = sld [smem:[#allocation0]]
  $region30: #{lora_plus_forward.1} parent=0
    _
  %s6 = ssub.s32 1, %s4
  %s7 = scalar_select 0, %s6, %s4
  // Predicated region
  $region2: #{lora_plus_forward.1} parent=0 // pred_check
    _
  $region3: #{lora_plus_forward.1} parent=0 // pred_check_branch
    %9 = sbr.rel (0) target = $region5
  $region4: #{lora_plus_forward.1} parent=0 // pred_region
    _
  $region5: #{lora_plus_forward.1} parent=0 // pred_fallthru
    _
  // Predicated region
  $region6: #{lora_plus_forward.1} parent=0 // pred_check
    _
  $region7: #{lora_plus_forward.1} parent=0 // pred_check_branch
    %11 = sbr.rel (0) target = $region9
  $region8: #{lora_plus_forward.1} parent=0 // pred_region
    _
  $region9: #{lora_plus_forward.1} parent=0 // pred_fallthru
    _
  // Predicated region
  $region10: #{lora_plus_forward.1} parent=0 // pred_check
    _
  $region11: #{lora_plus_forward.1} parent=0 // pred_check_branch
    %13 = sbr.rel (0) target = $region13
  $region12: #{lora_plus_forward.1} parent=0 // pred_region
    _
  $region13: #{lora_plus_forward.1} parent=0 // pred_fallthru
    _
  %p14 = scmp.eq.s32.totalorder 0, 0
  // Predicated region
  $region14: #{lora_plus_forward.1} parent=0 // pred_check
    %p15 = pneg %p14
  $region15: #{lora_plus_forward.1} parent=0 // pred_check_branch
    %17 = sbr.rel (%p15) target = $region17
  $region16: #{lora_plus_forward.1} parent=0 // pred_region
    %18 = vst [vmem:[#allocation2] sm:$0xff] 0.0
    %19 = vst [vmem:[#allocation2 + $0x8] sm:$0xff] 0.0
  $region17: #{lora_plus_forward.1} parent=0 // pred_fallthru
    _
  %v20 = vld [vmem:[#allocation2] sm:$0xff]
  %v21 = vld [vmem:[#allocation2 + $0x8] sm:$0xff]
  %v22 = vld [vmem:[%s0] sm:$0xff]
  %v23 = vld [vmem:[%s0 + $0x8] sm:$0xff]
  %v24 = vld [vmem:[%s1] sm:$0xff]
  %v25 = vld [vmem:[%s1 + $0x8] sm:$0xff]
  %v26 = vld [vmem:[%s1 + $0x10] sm:$0xff]
  %v27 = vld [vmem:[%s1 + $0x18] sm:$0xff]
  %v28 = vld [vmem:[%s1 + $0x20] sm:$0xff]
  %v29 = vld [vmem:[%s1 + $0x28] sm:$0xff]
  %v30 = vld [vmem:[%s1 + $0x30] sm:$0xff]
  %v31 = vld [vmem:[%s1 + $0x38] sm:$0xff]
  %v32 = vld [vmem:[%s1 + $0x40] sm:$0xff]
  %v33 = vld [vmem:[%s1 + $0x48] sm:$0xff]
  %v34 = vld [vmem:[%s1 + $0x50] sm:$0xff]
  %v35 = vld [vmem:[%s1 + $0x58] sm:$0xff]
  %v36 = vld [vmem:[%s1 + $0x60] sm:$0xff]
  %v37 = vld [vmem:[%s1 + $0x68] sm:$0xff]
  %v38 = vld [vmem:[%s1 + $0x70] sm:$0xff]
  %v39 = vld [vmem:[%s1 + $0x78] sm:$0xff]
  %40 = vmatpush.msra.mxu0 %v39
  %41 = vmatpush.msra.mxu0 %v38
  %42 = vmatpush.msra.mxu0 %v37
  %43 = vmatpush.msra.mxu0 %v36
  %44 = vmatpush.msra.mxu0 %v35
  %45 = vmatpush.msra.mxu0 %v34
  %46 = vmatpush.msra.mxu0 %v33
  %47 = vmatpush.msra.mxu0 %v32
  %48 = vmatpush.msra.mxu0 %v31
  %49 = vmatpush.msra.mxu0 %v30
  %50 = vmatpush.msra.mxu0 %v29
  %51 = vmatpush.msra.mxu0 %v28
  %52 = vmatpush.msra.mxu0 %v27
  %53 = vmatpush.msra.mxu0 %v26
  %54 = vmatpush.msra.mxu0 %v25
  %55 = vmatpush.msra.mxu0 %v24
  %56 = vmatmul.f32.gmra.mxu0 %v22
  %v57 = vpop.f32.mrf.mxu0
  %v58 = vadd.f32 0.0, %v57
  %59 = vmatmul.f32.gmra.mxu0 %v23
  %v60 = vpop.f32.mrf.mxu0
  %v61 = vadd.f32 0.0, %v60
  %62 = vdwg.mxu0
  %v63 = vadd.f32 %v20, %v58
  %v64 = vadd.f32 %v21, %v61
  %65 = vst [vmem:[#allocation2] sm:$0xff] %v63
  %66 = vst [vmem:[#allocation2 + $0x8] sm:$0xff] %v64
  // Predicated region
  $region18: #{lora_plus_forward.1} parent=0 // pred_check
    %p67 = pneg %p14
  $region19: #{lora_plus_forward.1} parent=0 // pred_check_branch
    %69 = sbr.rel (%p67) target = $region21
  $region20: #{lora_plus_forward.1} parent=0 // pred_region
    %v70 = vld [vmem:[#allocation2] sm:$0xff]
    %v71 = vld [vmem:[#allocation2 + $0x8] sm:$0xff]
    %v72 = vld [vmem:[%s2] sm:$0x1]
    %v74 = vperm.slane %v72, 0
    %v76 = vadd.f32 %v70, %v74
    %v77 = vadd.f32 %v71, %v74
    %78 = vst [vmem:[%s3] sm:$0xff] %v76
    %79 = vst [vmem:[%s3 + $0x8] sm:$0xff] %v77
  $region21: #{lora_plus_forward.1} parent=0 // pred_fallthru
    _
  // Predicated region
  $region22: #{lora_plus_forward.1} parent=0 // pred_check
    _
  $region23: #{lora_plus_forward.1} parent=0 // pred_check_branch
    %81 = sbr.rel (0) target = $region25
  $region24: #{lora_plus_forward.1} parent=0 // pred_region
    _
  $region25: #{lora_plus_forward.1} parent=0 // pred_fallthru
    _
  // Predicated region
  $region26: #{lora_plus_forward.1} parent=0 // pred_check
    _
  $region27: #{lora_plus_forward.1} parent=0 // pred_check_branch
    %83 = sbr.rel (0) target = $region29
  $region28: #{lora_plus_forward.1} parent=0 // pred_region
    _
  $region29: #{lora_plus_forward.1} parent=0 // pred_fallthru
    _

</llo_original>
